<compile_context>
chip_gen: v6e
topology: v6e:2x2x1
jax: 0.10.0
libtpu: 0.0.40
codegen_flags: <defaults>
</compile_context>

<pallas_src>
import jax
import jax.numpy as jnp
from jax.experimental import pallas as pl
from jax.experimental.pallas import tpu as pltpu

# Taps in torch.cat order [dx, dy, dxx, dxy, dyy] (used only by the reference).
_FILTERS = (
    ((-1.0, 0.0, 1.0), (-2.0, 0.0, 2.0), (-1.0, 0.0, 1.0)),   # dx
    ((-1.0, 2.0, -1.0), (0.0, 0.0, 0.0), (1.0, 2.0, 1.0)),    # dy
    ((0.0, 0.0, 0.0), (1.0, -2.0, 1.0), (0.0, 0.0, 0.0)),     # dxx
    ((0.0, 1.0, 0.0), (1.0, -4.0, 1.0), (0.0, 1.0, 0.0)),     # dxy = dxx + dyy
    ((0.0, 1.0, 0.0), (0.0, -2.0, 0.0), (0.0, 1.0, 0.0)),     # dyy
)

_VREG_BYTES = 8 * 128 * 4   # one (8,128) f32 tile


def _grad_stencil(x, top, bot, out_ref):
    """Write the five 3x3 gradient maps of x into out_ref.

    x:   (B, TH, W) f32 rows of the current tile.
    top: (B, 1, W) f32 row just above the tile, or None (== zeros, image top).
    bot: (B, 1, W) f32 row just below the tile, or None (== zeros, bottom).
    out_ref: (B, 5, TH, W) output block [Fx, Fy, Fxx, Fxy, Fyy].
    """
    B, TH, W = x.shape
    zero = jnp.float32(0.0)

    # Boundary / tile-edge masks (hoisted; shared by all filters and images).
    col = jax.lax.broadcasted_iota(jnp.int32, (1, 1, W), 2)
    has_lf = col > 0
    has_rt = col < W - 1
    row = jax.lax.broadcasted_iota(jnp.int32, (1, TH, 1), 1)
    is_top = row == 0
    is_bot = row == TH - 1

    def hshift(a):
        # Left / right neighbours a[.., j-1] / a[.., j+1], zero at the border.
        # pltpu.roll follows jnp.roll semantics: out[j] = in[j - shift].
        al = jnp.where(has_lf, pltpu.roll(a, 1, 2), zero)
        ar = jnp.where(has_rt, pltpu.roll(a, W - 1, 2), zero)
        return al, ar

    def vup(a, a_top):   # a[.., i-1, :]; row 0 of the tile supplied by a_top
        return jnp.where(is_top, a_top, pltpu.roll(a, 1, 1))

    def vdn(a, a_bot):   # a[.., i+1, :]; row TH-1 supplied by a_bot
        return jnp.where(is_bot, a_bot, pltpu.roll(a, TH - 1, 1))

    xl, xr = hshift(x)
    two_x = x + x                      # add-only "2*x"
    hsum, hdif = xl + xr, xr - xl      # [1,.,1] and [-1,.,1] horizontal slabs

    if top is None:                    # global image top: implicit zero pad
        top = t_sum = t_dif = two_t = zero
    else:
        tl, tr = hshift(top)
        t_sum, t_dif = tl + tr, tr - tl
        two_t = top + top
    if bot is None:                    # global image bottom
        bot = b_sum = b_dif = two_b = zero
    else:
        bl, br = hshift(bot)
        b_sum, b_dif = bl + br, br - bl
        two_b = bot + bot

    xu = vup(x, top)                   # x[i-1, j]
    xd = vdn(x, bot)                   # x[i+1, j]

    # Fx: vertical [1, 2, 1] smoothing of the horizontal difference.
    fx = vup(hdif, t_dif) + (hdif + hdif) + vdn(hdif, b_dif)
    # Fy: row above [-1, 2, -1]  +  row below [1, 2, 1].
    fy = vup(two_x - hsum, two_t - t_sum) + vdn(two_x + hsum, two_b + b_sum)
    # Second derivatives; dxy taps == dxx + dyy exactly (bit-exact reuse).
    fxx = hsum - two_x
    fyy = (xu + xd) - two_x
    fxy = fxx + fyy

    out_ref[:, 0] = fx
    out_ref[:, 1] = fy
    out_ref[:, 2] = fxx
    out_ref[:, 3] = fxy
    out_ref[:, 4] = fyy


def _kernel_whole(x_ref, out_ref):
    # Whole-image blocks: the implicit zero padding is entirely in-tile.
    x = x_ref[...][:, 0].astype(jnp.float32)            # (bb, H, W)
    _grad_stencil(x, None, None, out_ref)


def _kernel_tiled(x_ref, up_ref, dn_ref, out_ref):
    # H-tiled blocks with a 1-row halo fetched via two extra 8-row BlockSpecs.
    h = pl.program_id(1)
    nh = pl.num_programs(1)
    x = x_ref[...][:, 0].astype(jnp.float32)             # (bb, TH, W)
    top = up_ref[...][:, 0, 7:8, :].astype(jnp.float32)  # global row h*TH - 1
    bot = dn_ref[...][:, 0, 0:1, :].astype(jnp.float32)  # global row (h+1)*TH
    top = jnp.where(h > 0, top, 0.0)                     # zero pad at image top
    bot = jnp.where(h < nh - 1, bot, 0.0)                # zero pad at bottom
    _grad_stencil(x, top, bot, out_ref)


def _largest_divisor_le(n, cap):
    cap = max(1, min(n, cap))
    for d in range(cap, 0, -1):
        if n % d == 0:
            return d
    return 1


def _tpu_params():
    """(vmem_limit_bytes, tensorcores_per_chip) with conservative fallbacks."""
    phys_vmem = 64 * 1024 * 1024          # v7x per-TensorCore size = safe floor
    num_tc = 1
    try:
        info = pltpu.get_tpu_info()
        phys_vmem = int(getattr(info, "vmem_capacity_bytes", phys_vmem)) or phys_vmem
        for attr in ("num_cores", "tensorcores_per_chip", "core_count"):
            v = getattr(info, attr, None)
            if v:
                num_tc = max(num_tc, int(v))
                break
    except Exception:
        pass
    try:
        kind = jax.devices()[0].device_kind.lower()
        if any(t in kind for t in ("v4", "v5p", "v7", "7x")):
            num_tc = max(num_tc, 2)       # megacore / dual-TC chips
    except Exception:
        pass
    # Half the physical VMEM, clamped to [32 MiB, 96 MiB]:
    #   v5e/v6e (128 MiB physical) -> 64 MiB;  v7x (64 MiB per TC) -> 32 MiB.
    vmem_limit = min(max(phys_vmem // 2, 32 * 1024 * 1024), 96 * 1024 * 1024)
    return vmem_limit, num_tc


def _choose_blocks(N, H, W, vmem_limit, num_tc):
    """Pick (batch_block, height_block) for an (N, 1, H, W) input.

    VMEM accounting is done in (8,128) f32 vregs (so narrow-W padding waste is
    counted): per grid step we hold 2x double-buffered (1 input + 5 output)
    blocks plus ~8 live stencil temporaries, i.e. ~20 block-sized slabs.
    Target ~60% of the VMEM limit, leaving headroom for regalloc/spill slack.
    """
    wv = -(-W // 128)                               # lane tiles per row
    hv = -(-H // 8)                                 # sublane tiles per column
    slab_budget = max(8, (vmem_limit * 6 // 10) // (20 * _VREG_BYTES))
    img_vregs = hv * wv

    if img_vregs <= slab_budget:
        # Whole images per step; batch enough to amortize ~0.35us/step and
        # approach the HBM roofline (the kernel is memory bound, ~24 B/pixel).
        bb_cap = max(1, slab_budget // img_vregs)
        if num_tc > 1:
            # Multi-TensorCore: target >= 2*num_tc parallel grid steps, but
            # never shrink a step below ~128 KiB of block data.
            bb_par = max(1, N // (2 * num_tc))
            if bb_par * img_vregs >= 32:
                bb_cap = min(bb_cap, bb_par)
        return _largest_divisor_le(N, bb_cap), H

    # A single image exceeds the budget: keep W whole (lane-dense stores) and
    # tile H into multiple-of-8 row blocks with a 1-row halo.
    th_cap = max(8, (slab_budget // wv) * 8)
    best = 0
    if H % 8 == 0:
        for d in range(8, H, 8):
            if H % d == 0 and d <= th_cap:
                best = d
    if best:
        return 1, best
    # TODO(synk): masked partial H blocks for heights with no usable
    # multiple-of-8 divisor under the budget; fall back to whole-image blocks.
    return 1, H


def multigrad(x, *, batch_block=None, height_block=None):
    """x: (N, 1, H, W) -> (N, 5, H, W) float32, channels [Fx, Fy, Fxx, Fxy, Fyy]."""
    N, C, H, W = x.shape
    assert C == 1, "MultiGrad filters have a single input channel"

    vmem_limit, num_tc = _tpu_params()
    bb, th = _choose_blocks(N, H, W, vmem_limit, num_tc)
    if batch_block is not None:
        bb = batch_block
    if height_block is not None:
        th = height_block
    assert N % bb == 0, (N, bb)
    assert H % th == 0, (H, th)
    tiled = th < H
    assert (not tiled) or th % 8 == 0, "H tiles must be multiples of 8 rows"

    grid = (N // bb, H // th)
    x_spec = pl.BlockSpec((bb, 1, th, W), lambda n, h: (n, 0, h, 0))
    out_spec = pl.BlockSpec((bb, 5, th, W), lambda n, h: (n, 0, h, 0))
    out_shape = jax.ShapeDtypeStruct((N, 5, H, W), jnp.float32)
    cparams = pltpu.CompilerParams(
        dimension_semantics=("parallel", "parallel"),
        vmem_limit_bytes=vmem_limit,
    )

    if not tiled:
        return pl.pallas_call(
            _kernel_whole,
            out_shape=out_shape,
            grid_spec=pltpu.PrefetchScalarGridSpec(
                num_scalar_prefetch=0, grid=grid,
                in_specs=[x_spec], out_specs=out_spec),
            compiler_params=cparams,
        )(x)

    # H-tiled path: the 1-row halo above/below each tile is fetched through
    # two extra auto-pipelined 8-row blocks of the SAME input array (clamped
    # index maps); out-of-image halos are masked to zero inside the kernel.
    thb = th // 8                      # H-tile size in 8-row blocks
    nhb = H // 8                       # image height in 8-row blocks
    up_spec = pl.BlockSpec(
        (bb, 1, 8, W),
        lambda n, h: (n, 0, jnp.maximum(h * thb - 1, 0), 0))
    dn_spec = pl.BlockSpec(
        (bb, 1, 8, W),
        lambda n, h: (n, 0, jnp.minimum((h + 1) * thb, nhb - 1), 0))
    return pl.pallas_call(
        _kernel_tiled,
        out_shape=out_shape,
        grid_spec=pltpu.PrefetchScalarGridSpec(
            num_scalar_prefetch=0, grid=grid,
            in_specs=[x_spec, up_spec, dn_spec], out_specs=out_spec),
        compiler_params=cparams,
    )(x, x, x)


def _reference(x):
    """Pure-JAX reference via lax.conv (NCHW), matching F.conv2d(padding=1)."""
    w = jnp.stack([jnp.array(f, dtype=jnp.float32) for f in _FILTERS])  # (5,3,3)
    w = w[:, None, :, :]                                                # OIHW
    return jax.lax.conv_general_dilated(
        x.astype(jnp.float32), w,
        window_strides=(1, 1), padding=((1, 1), (1, 1)),
        dimension_numbers=("NCHW", "OIHW", "NCHW"),
    )


if __name__ == "__main__":
    key0, key1 = jax.random.split(jax.random.PRNGKey(0))

    # 1) Small images: whole-image (non-tiled) path with automatic block sizing.
    N, H, W = 2, 16, 16
    x = jax.random.normal(key0, (N, 1, H, W), dtype=jnp.float32)
    out = jax.block_until_ready(multigrad(x))
    ref = _reference(x)
    assert out.shape == (N, 5, H, W)
    assert jnp.allclose(out, ref, atol=1e-5, rtol=1e-5)

    # 2) Force the H-halo-tiled path on a lane-dense width (W % 128 == 0).
    N2, H2, W2 = 2, 32, 128
    x2 = jax.random.normal(key1, (N2, 1, H2, W2), dtype=jnp.float32)
    out2 = jax.block_until_ready(multigrad(x2, batch_block=1, height_block=16))
    ref2 = _reference(x2)
    assert out2.shape == (N2, 5, H2, W2)
    assert jnp.allclose(out2, ref2, atol=1e-5, rtol=1e-5)

    print("KERNEL_OK")
</pallas_src>

<mosaic_0001>
module attributes {stable_mosaic.version = 11 : i64} {
  func.func @_kernel_whole(%arg0: i32, %arg1: i32, %arg2: memref<2x1x16x16xf32, #tpu.memory_space<vmem>>, %arg3: memref<2x5x16x16xf32, #tpu.memory_space<vmem>>) attributes {dimension_semantics = [#tpu.dimension_semantics<parallel>, #tpu.dimension_semantics<parallel>], iteration_bounds = array<i64: 1, 1>, scalar_prefetch = 0 : i64, scratch_operands = 0 : i64, tpu.core_type = #tpu.core_type<tc>, window_params = [{transform_indices = @transform_0, window_bounds = array<i64: 2, 1, 16, 16>}, {transform_indices = @transform_1, window_bounds = array<i64: 2, 5, 16, 16>}]} {
    %c0 = arith.constant 0 : index
    %c0_0 = arith.constant 0 : index
    %c0_1 = arith.constant 0 : index
    %c0_2 = arith.constant 0 : index
    %0 = vector.load %arg2[%c0, %c0_0, %c0_1, %c0_2] : memref<2x1x16x16xf32, #tpu.memory_space<vmem>>, vector<2x1x16x16xf32>
    %1 = vector.shape_cast %0 : vector<2x1x16x16xf32> to vector<2x16x16xf32>
    %2 = tpu.iota {dimensions = array<i32: 2>} : vector<1x1x16xi32>
    %c0_i32 = arith.constant 0 : i32
    %3 = vector.broadcast %c0_i32 : i32 to vector<1x1x16xi32>
    %4 = arith.cmpi sgt, %2, %3 : vector<1x1x16xi32>
    %c15_i32 = arith.constant 15 : i32
    %5 = vector.broadcast %c15_i32 : i32 to vector<1x1x16xi32>
    %6 = arith.cmpi slt, %2, %5 : vector<1x1x16xi32>
    %7 = tpu.iota {dimensions = array<i32: 1>} : vector<1x16x1xi32>
    %c0_i32_3 = arith.constant 0 : i32
    %8 = vector.broadcast %c0_i32_3 : i32 to vector<1x16x1xi32>
    %9 = arith.cmpi eq, %7, %8 : vector<1x16x1xi32>
    %c15_i32_4 = arith.constant 15 : i32
    %10 = vector.broadcast %c15_i32_4 : i32 to vector<1x16x1xi32>
    %11 = arith.cmpi eq, %7, %10 : vector<1x16x1xi32>
    %c1_i32 = arith.constant 1 : i32
    %12 = tpu.dynamic_rotate %1 by %c1_i32 dim 2 : vector<2x16x16xf32>, i32 -> vector<2x16x16xf32>
    %cst = arith.constant 0.000000e+00 : f32
    %13 = vector.shape_cast %4 : vector<1x1x16xi1> to vector<1x1x16xi1>
    %14 = vector.broadcast %13 : vector<1x1x16xi1> to vector<2x16x16xi1>
    %15 = vector.broadcast %cst : f32 to vector<2x16x16xf32>
    %16 = arith.select %14, %12, %15 : vector<2x16x16xi1>, vector<2x16x16xf32>
    %c15_i32_5 = arith.constant 15 : i32
    %17 = tpu.dynamic_rotate %1 by %c15_i32_5 dim 2 : vector<2x16x16xf32>, i32 -> vector<2x16x16xf32>
    %cst_6 = arith.constant 0.000000e+00 : f32
    %18 = vector.shape_cast %6 : vector<1x1x16xi1> to vector<1x1x16xi1>
    %19 = vector.broadcast %18 : vector<1x1x16xi1> to vector<2x16x16xi1>
    %20 = vector.broadcast %cst_6 : f32 to vector<2x16x16xf32>
    %21 = arith.select %19, %17, %20 : vector<2x16x16xi1>, vector<2x16x16xf32>
    %22 = arith.addf %1, %1 : vector<2x16x16xf32>
    %23 = arith.addf %16, %21 : vector<2x16x16xf32>
    %24 = arith.subf %21, %16 : vector<2x16x16xf32>
    %c1_i32_7 = arith.constant 1 : i32
    %25 = tpu.dynamic_rotate %1 by %c1_i32_7 dim 1 : vector<2x16x16xf32>, i32 -> vector<2x16x16xf32>
    %cst_8 = arith.constant 0.000000e+00 : f32
    %26 = vector.shape_cast %9 : vector<1x16x1xi1> to vector<1x16x1xi1>
    %27 = vector.broadcast %26 : vector<1x16x1xi1> to vector<2x16x16xi1>
    %28 = vector.broadcast %cst_8 : f32 to vector<2x16x16xf32>
    %29 = arith.select %27, %28, %25 : vector<2x16x16xi1>, vector<2x16x16xf32>
    %c15_i32_9 = arith.constant 15 : i32
    %30 = tpu.dynamic_rotate %1 by %c15_i32_9 dim 1 : vector<2x16x16xf32>, i32 -> vector<2x16x16xf32>
    %cst_10 = arith.constant 0.000000e+00 : f32
    %31 = vector.shape_cast %11 : vector<1x16x1xi1> to vector<1x16x1xi1>
    %32 = vector.broadcast %31 : vector<1x16x1xi1> to vector<2x16x16xi1>
    %33 = vector.broadcast %cst_10 : f32 to vector<2x16x16xf32>
    %34 = arith.select %32, %33, %30 : vector<2x16x16xi1>, vector<2x16x16xf32>
    %c1_i32_11 = arith.constant 1 : i32
    %35 = tpu.dynamic_rotate %24 by %c1_i32_11 dim 1 : vector<2x16x16xf32>, i32 -> vector<2x16x16xf32>
    %cst_12 = arith.constant 0.000000e+00 : f32
    %36 = vector.shape_cast %9 : vector<1x16x1xi1> to vector<1x16x1xi1>
    %37 = vector.broadcast %36 : vector<1x16x1xi1> to vector<2x16x16xi1>
    %38 = vector.broadcast %cst_12 : f32 to vector<2x16x16xf32>
    %39 = arith.select %37, %38, %35 : vector<2x16x16xi1>, vector<2x16x16xf32>
    %40 = arith.addf %24, %24 : vector<2x16x16xf32>
    %41 = arith.addf %39, %40 : vector<2x16x16xf32>
    %c15_i32_13 = arith.constant 15 : i32
    %42 = tpu.dynamic_rotate %24 by %c15_i32_13 dim 1 : vector<2x16x16xf32>, i32 -> vector<2x16x16xf32>
    %cst_14 = arith.constant 0.000000e+00 : f32
    %43 = vector.shape_cast %11 : vector<1x16x1xi1> to vector<1x16x1xi1>
    %44 = vector.broadcast %43 : vector<1x16x1xi1> to vector<2x16x16xi1>
    %45 = vector.broadcast %cst_14 : f32 to vector<2x16x16xf32>
    %46 = arith.select %44, %45, %42 : vector<2x16x16xi1>, vector<2x16x16xf32>
    %47 = arith.addf %41, %46 : vector<2x16x16xf32>
    %48 = arith.subf %22, %23 : vector<2x16x16xf32>
    %cst_15 = arith.constant 0.000000e+00 : f32
    %cst_16 = arith.constant 0.000000e+00 : f32
    %49 = arith.subf %cst_15, %cst_16 : f32
    %c1_i32_17 = arith.constant 1 : i32
    %50 = tpu.dynamic_rotate %48 by %c1_i32_17 dim 1 : vector<2x16x16xf32>, i32 -> vector<2x16x16xf32>
    %51 = vector.shape_cast %9 : vector<1x16x1xi1> to vector<1x16x1xi1>
    %52 = vector.broadcast %51 : vector<1x16x1xi1> to vector<2x16x16xi1>
    %53 = vector.broadcast %49 : f32 to vector<2x16x16xf32>
    %54 = arith.select %52, %53, %50 : vector<2x16x16xi1>, vector<2x16x16xf32>
    %55 = arith.addf %22, %23 : vector<2x16x16xf32>
    %cst_18 = arith.constant 0.000000e+00 : f32
    %cst_19 = arith.constant 0.000000e+00 : f32
    %56 = arith.addf %cst_18, %cst_19 : f32
    %c15_i32_20 = arith.constant 15 : i32
    %57 = tpu.dynamic_rotate %55 by %c15_i32_20 dim 1 : vector<2x16x16xf32>, i32 -> vector<2x16x16xf32>
    %58 = vector.shape_cast %11 : vector<1x16x1xi1> to vector<1x16x1xi1>
    %59 = vector.broadcast %58 : vector<1x16x1xi1> to vector<2x16x16xi1>
    %60 = vector.broadcast %56 : f32 to vector<2x16x16xf32>
    %61 = arith.select %59, %60, %57 : vector<2x16x16xi1>, vector<2x16x16xf32>
    %62 = arith.addf %54, %61 : vector<2x16x16xf32>
    %63 = arith.subf %23, %22 : vector<2x16x16xf32>
    %64 = arith.addf %29, %34 : vector<2x16x16xf32>
    %65 = arith.subf %64, %22 : vector<2x16x16xf32>
    %66 = arith.addf %63, %65 : vector<2x16x16xf32>
    %c0_21 = arith.constant 0 : index
    %c0_22 = arith.constant 0 : index
    %c0_23 = arith.constant 0 : index
    %c0_24 = arith.constant 0 : index
    %67 = vector.load %arg3[%c0_21, %c0_22, %c0_23, %c0_24] : memref<2x5x16x16xf32, #tpu.memory_space<vmem>>, vector<2x1x16x16xf32>
    %68 = vector.shape_cast %67 : vector<2x1x16x16xf32> to vector<2x16x16xf32>
    %69 = vector.shape_cast %47 : vector<2x16x16xf32> to vector<2x1x16x16xf32>
    tpu.vector_store %arg3[%c0_21, %c0_22, %c0_23, %c0_24], %69 {strides = array<i32>} : memref<2x5x16x16xf32, #tpu.memory_space<vmem>>, vector<2x1x16x16xf32>,
    %c0_25 = arith.constant 0 : index
    %c1 = arith.constant 1 : index
    %c0_26 = arith.constant 0 : index
    %c0_27 = arith.constant 0 : index
    %70 = vector.load %arg3[%c0_25, %c1, %c0_26, %c0_27] : memref<2x5x16x16xf32, #tpu.memory_space<vmem>>, vector<2x1x16x16xf32>
    %71 = vector.shape_cast %70 : vector<2x1x16x16xf32> to vector<2x16x16xf32>
    %72 = vector.shape_cast %62 : vector<2x16x16xf32> to vector<2x1x16x16xf32>
    tpu.vector_store %arg3[%c0_25, %c1, %c0_26, %c0_27], %72 {strides = array<i32>} : memref<2x5x16x16xf32, #tpu.memory_space<vmem>>, vector<2x1x16x16xf32>,
    %c0_28 = arith.constant 0 : index
    %c2 = arith.constant 2 : index
    %c0_29 = arith.constant 0 : index
    %c0_30 = arith.constant 0 : index
    %73 = vector.load %arg3[%c0_28, %c2, %c0_29, %c0_30] : memref<2x5x16x16xf32, #tpu.memory_space<vmem>>, vector<2x1x16x16xf32>
    %74 = vector.shape_cast %73 : vector<2x1x16x16xf32> to vector<2x16x16xf32>
    %75 = vector.shape_cast %63 : vector<2x16x16xf32> to vector<2x1x16x16xf32>
    tpu.vector_store %arg3[%c0_28, %c2, %c0_29, %c0_30], %75 {strides = array<i32>} : memref<2x5x16x16xf32, #tpu.memory_space<vmem>>, vector<2x1x16x16xf32>,
    %c0_31 = arith.constant 0 : index
    %c3 = arith.constant 3 : index
    %c0_32 = arith.constant 0 : index
    %c0_33 = arith.constant 0 : index
    %76 = vector.load %arg3[%c0_31, %c3, %c0_32, %c0_33] : memref<2x5x16x16xf32, #tpu.memory_space<vmem>>, vector<2x1x16x16xf32>
    %77 = vector.shape_cast %76 : vector<2x1x16x16xf32> to vector<2x16x16xf32>
    %78 = vector.shape_cast %66 : vector<2x16x16xf32> to vector<2x1x16x16xf32>
    tpu.vector_store %arg3[%c0_31, %c3, %c0_32, %c0_33], %78 {strides = array<i32>} : memref<2x5x16x16xf32, #tpu.memory_space<vmem>>, vector<2x1x16x16xf32>,
    %c0_34 = arith.constant 0 : index
    %c4 = arith.constant 4 : index
    %c0_35 = arith.constant 0 : index
    %c0_36 = arith.constant 0 : index
    %79 = vector.load %arg3[%c0_34, %c4, %c0_35, %c0_36] : memref<2x5x16x16xf32, #tpu.memory_space<vmem>>, vector<2x1x16x16xf32>
    %80 = vector.shape_cast %79 : vector<2x1x16x16xf32> to vector<2x16x16xf32>
    %81 = vector.shape_cast %65 : vector<2x16x16xf32> to vector<2x1x16x16xf32>
    tpu.vector_store %arg3[%c0_34, %c4, %c0_35, %c0_36], %81 {strides = array<i32>} : memref<2x5x16x16xf32, #tpu.memory_space<vmem>>, vector<2x1x16x16xf32>,
    return
  }
  func.func @transform_0(%arg0: i32, %arg1: i32) -> (i32, i32, i32, i32) {
    %c0_i32 = arith.constant 0 : i32
    %c0_i32_0 = arith.constant 0 : i32
    %c0_i32_1 = arith.constant 0 : i32
    return %arg0, %c0_i32, %arg1, %c0_i32_0 : i32, i32, i32, i32
  }
  func.func @transform_1(%arg0: i32, %arg1: i32) -> (i32, i32, i32, i32) {
    %c0_i32 = arith.constant 0 : i32
    %c0_i32_0 = arith.constant 0 : i32
    %c0_i32_1 = arith.constant 0 : i32
    return %arg0, %c0_i32, %arg1, %c0_i32_0 : i32, i32, i32, i32
  }
}

</mosaic_0001>

<llo_original>
// kernel: tpu_custom_call.1
$region0: #{tpu_custom_call.1}
  #allocation0 [shape = 'u32[]', space=smem, size = 0x4, offset = 0x4, fixed_abs, tag = 'smem constant byte address 0x4 - core index']
  #allocation1 [shape = 'u32[144,128]{1,0:T(1,128)}', space=vmem, size = 0x12000, scoped, tag = 'internal scratch']
  %s0 = inlined_call_operand.hbm [shape: f32[2,1,16,16], index: 0, kind: input, shape index: {}]
  %s1 = inlined_call_operand.hbm [shape: f32[2,5,16,16], index: 1, kind: output, shape index: {}]
  %s2 = sld [smem:[#allocation0]]
  $region18: #{tpu_custom_call.1} parent=0
    _
  %s4 = ssub.s32 1, %s2
  %s5 = scalar_select 0, %s4, %s2
  $region1: #{tpu_custom_call.1} parent=0
    #allocation2 [shape = 'u8[16384]{0}', space=vmem, size = 0x4000, scoped, tag = 'input window, operand 0, single buffered']
    #allocation3 [shape = 's32[1]{0}', space=sflag, size = 0x4, scoped, tag = 'scoped memory for tpu_custom_call.1']
    #allocation4 [shape = 's32[1]{0}', space=sflag, size = 0x4, scoped, tag = 'scoped memory for tpu_custom_call.1']
    #allocation5 [shape = 'u8[81920]{0}', space=vmem, size = 0x14000, scoped, tag = 'output window, operand 0, single buffered']
    %6 = vsyncpa [#allocation3], 0
    %7 = vsyncpa [#allocation4], 0
    // Predicated region
    $region2: #{tpu_custom_call.1} parent=1 // pred_check
      _
    $region3: #{tpu_custom_call.1} parent=1 // pred_check_branch
      %9 = sbr.rel (0) target = $region5
    $region4: #{tpu_custom_call.1} parent=1 // pred_region
      %s11 = ssub.s32 512, 512
      %12 = vsyncadd [#allocation3], %s11
      %s13 = sshll.u32 [#allocation2], 4
      %s14 = int_to_ptr.vmem [resolvable:$true] %s13
      %19 = dma.hbm_to_vmem [thread:$0]  %s0, 512, %s14, [#allocation3], 128, 128, 8
    $region5: #{tpu_custom_call.1} parent=1 // pred_fallthru
      _
    // Predicated region
    $region6: #{tpu_custom_call.1} parent=1 // pred_check
      _
    $region7: #{tpu_custom_call.1} parent=1 // pred_check_branch
      %21 = sbr.rel (0) target = $region9
    $region8: #{tpu_custom_call.1} parent=1 // pred_region
      %22 = dma.done [#allocation3], 512
    $region9: #{tpu_custom_call.1} parent=1 // pred_fallthru
      _
    %v23 = vld [vmem:[#allocation2] sm:$0xff]
    %v24 = vld [vmem:[#allocation2 + $0x8] sm:$0xff]
    %v25 = vld [vmem:[#allocation2 + $0x10] sm:$0xff]
    %v26 = vld [vmem:[#allocation2 + $0x18] sm:$0xff]
    %v27 = vlaneseq
    %v28 = vand.u32 %v27, 127
    %vm29 = vcmp.gt.s32.totalorder %v28, 0
    %vm30 = vcmp.lt.s32.totalorder %v28, 15
    %v31 = vlaneseq
    %v32 = vshrl.u32 %v31, 7
    %v33 = vadd.s32 %v32, 8
    %vm34 = vcmp.eq.s32.totalorder %v32, 0
    %vm35 = vcmp.eq.s32.totalorder %v33, 0
    %vm36 = vcmp.eq.s32.totalorder %v32, 15
    %vm37 = vcmp.eq.s32.totalorder %v33, 15
    %vm38 = vcmask 1047680
    %39 = vrot.lane.b32.xlu0 %v23, 16
    %v40 = vpop.permute.xlu0 %39
    %v41 = vsel %vm38, %v40, %v23
    %42 = vrot.lane.b32.xlu0 %v24, 16
    %v43 = vpop.permute.xlu0 %42
    %v44 = vsel %vm38, %v43, %v24
    %45 = vrot.lane.b32.xlu0 %v25, 16
    %v46 = vpop.permute.xlu0 %45
    %v47 = vsel %vm38, %v46, %v25
    %48 = vrot.lane.b32.xlu0 %v26, 16
    %v49 = vpop.permute.xlu0 %48
    %v50 = vsel %vm38, %v49, %v26
    %51 = vrot.lane.b32.xlu0 %v41, 16
    %v52 = vpop.permute.xlu0 %51
    %53 = vrot.lane.b32.xlu0 %v44, 16
    %v54 = vpop.permute.xlu0 %53
    %55 = vrot.lane.b32.xlu0 %v47, 16
    %v56 = vpop.permute.xlu0 %55
    %57 = vrot.lane.b32.xlu0 %v50, 16
    %v58 = vpop.permute.xlu0 %57
    %v59 = vsel %vm38, %v52, %v23
    %v60 = vsel %vm38, %v54, %v24
    %v61 = vsel %vm38, %v56, %v25
    %v62 = vsel %vm38, %v58, %v26
    %v63 = vsel %vm29, 1, 0
    %vm64 = vcmp.eq.s32.totalorder %v63, 1
    %69 = vrot.lane.b32.xlu0 %v59, 113
    %v70 = vpop.permute.xlu0 %69
    %71 = vrot.lane.b32.xlu0 %v60, 113
    %v72 = vpop.permute.xlu0 %71
    %73 = vrot.lane.b32.xlu0 %v61, 113
    %v74 = vpop.permute.xlu0 %73
    %75 = vrot.lane.b32.xlu0 %v62, 113
    %v76 = vpop.permute.xlu0 %75
    %v81 = vsel %vm64, %v70, 0.0
    %v82 = vsel %vm64, %v72, 0.0
    %v83 = vsel %vm64, %v74, 0.0
    %v84 = vsel %vm64, %v76, 0.0
    %v85 = vsel %vm30, 1, 0
    %vm86 = vcmp.eq.s32.totalorder %v85, 1
    %87 = vrot.lane.b32.xlu0 %v59, 127
    %v88 = vpop.permute.xlu0 %87
    %89 = vrot.lane.b32.xlu0 %v60, 127
    %v90 = vpop.permute.xlu0 %89
    %91 = vrot.lane.b32.xlu0 %v61, 127
    %v92 = vpop.permute.xlu0 %91
    %93 = vrot.lane.b32.xlu0 %v62, 127
    %v94 = vpop.permute.xlu0 %93
    %v99 = vsel %vm86, %v88, 0.0
    %v100 = vsel %vm86, %v90, 0.0
    %v101 = vsel %vm86, %v92, 0.0
    %v102 = vsel %vm86, %v94, 0.0
    %v103 = vadd.f32 %v23, %v23
    %v104 = vadd.f32 %v24, %v24
    %v105 = vadd.f32 %v25, %v25
    %v106 = vadd.f32 %v26, %v26
    %v107 = vadd.f32 %v81, %v99
    %v108 = vadd.f32 %v82, %v100
    %v109 = vadd.f32 %v83, %v101
    %v110 = vadd.f32 %v84, %v102
    %v111 = vsub.f32 %v99, %v81
    %v112 = vsub.f32 %v100, %v82
    %v113 = vsub.f32 %v101, %v83
    %v114 = vsub.f32 %v102, %v84
    %v115 = vrot.slane %v23, 7
    %v116 = vrot.slane %v25, 7
    %v117 = vrot.slane %v24, 7
    %v118 = vrot.slane %v26, 7
    %vm119 = vcmp.lt.s32.totalorder %v32, 1
    %v120 = vsel %vm119, %v115, %v117
    %v121 = vsel %vm119, %v116, %v118
    %v122 = vsel %vm119, %v117, %v115
    %v123 = vsel %vm119, %v118, %v116
    %v124 = vsel %vm34, 1, 0
    %v125 = vsel %vm35, 1, 0
    %vm126 = vcmp.eq.s32.totalorder %v124, 1
    %vm127 = vcmp.eq.s32.totalorder %v125, 1
    %v128 = vsel %vm126, 0.0, %v122
    %v129 = vsel %vm127, 0.0, %v120
    %v130 = vsel %vm126, 0.0, %v123
    %v131 = vsel %vm127, 0.0, %v121
    %v132 = vrot.slane %v23, 1
    %v133 = vrot.slane %v25, 1
    %v134 = vrot.slane %v24, 1
    %v135 = vrot.slane %v26, 1
    %vm136 = vcmp.lt.s32.totalorder %v32, 7
    %v137 = vsel %vm136, %v132, %v134
    %v138 = vsel %vm136, %v133, %v135
    %v139 = vsel %vm136, %v134, %v132
    %v140 = vsel %vm136, %v135, %v133
    %v141 = vsel %vm36, 1, 0
    %v142 = vsel %vm37, 1, 0
    %vm143 = vcmp.eq.s32.totalorder %v141, 1
    %vm144 = vcmp.eq.s32.totalorder %v142, 1
    %v145 = vsel %vm143, 0.0, %v137
    %v146 = vsel %vm144, 0.0, %v139
    %v147 = vsel %vm143, 0.0, %v138
    %v148 = vsel %vm144, 0.0, %v140
    %v149 = vrot.slane %v111, 7
    %v150 = vrot.slane %v113, 7
    %v151 = vrot.slane %v112, 7
    %v152 = vrot.slane %v114, 7
    %v153 = vsel %vm119, %v149, %v151
    %v154 = vsel %vm119, %v150, %v152
    %v155 = vsel %vm119, %v151, %v149
    %v156 = vsel %vm119, %v152, %v150
    %v157 = vsel %vm126, 0.0, %v155
    %v158 = vsel %vm127, 0.0, %v153
    %v159 = vsel %vm126, 0.0, %v156
    %v160 = vsel %vm127, 0.0, %v154
    %v161 = vadd.f32 %v111, %v111
    %v162 = vadd.f32 %v112, %v112
    %v163 = vadd.f32 %v113, %v113
    %v164 = vadd.f32 %v114, %v114
    %v165 = vadd.f32 %v157, %v161
    %v166 = vadd.f32 %v158, %v162
    %v167 = vadd.f32 %v159, %v163
    %v168 = vadd.f32 %v160, %v164
    %v169 = vrot.slane %v111, 1
    %v170 = vrot.slane %v113, 1
    %v171 = vrot.slane %v112, 1
    %v172 = vrot.slane %v114, 1
    %v173 = vsel %vm136, %v169, %v171
    %v174 = vsel %vm136, %v170, %v172
    %v175 = vsel %vm136, %v171, %v169
    %v176 = vsel %vm136, %v172, %v170
    %v177 = vsel %vm143, 0.0, %v173
    %v178 = vsel %vm144, 0.0, %v175
    %v179 = vsel %vm143, 0.0, %v174
    %v180 = vsel %vm144, 0.0, %v176
    %v181 = vadd.f32 %v165, %v177
    %v182 = vadd.f32 %v166, %v178
    %v183 = vadd.f32 %v167, %v179
    %v184 = vadd.f32 %v168, %v180
    %v185 = vsub.f32 %v103, %v107
    %v186 = vsub.f32 %v104, %v108
    %v187 = vsub.f32 %v105, %v109
    %v188 = vsub.f32 %v106, %v110
    %v189 = vrot.slane %v185, 7
    %v190 = vrot.slane %v187, 7
    %v191 = vrot.slane %v186, 7
    %v192 = vrot.slane %v188, 7
    %v193 = vsel %vm119, %v189, %v191
    %v194 = vsel %vm119, %v190, %v192
    %v195 = vsel %vm119, %v191, %v189
    %v196 = vsel %vm119, %v192, %v190
    %v197 = vsel %vm126, 0.0, %v195
    %v198 = vsel %vm127, 0.0, %v193
    %v199 = vsel %vm126, 0.0, %v196
    %v200 = vsel %vm127, 0.0, %v194
    %v201 = vadd.f32 %v103, %v107
    %v202 = vadd.f32 %v104, %v108
    %v203 = vadd.f32 %v105, %v109
    %v204 = vadd.f32 %v106, %v110
    %v205 = vrot.slane %v201, 1
    %v206 = vrot.slane %v203, 1
    %v207 = vrot.slane %v202, 1
    %v208 = vrot.slane %v204, 1
    %v209 = vsel %vm136, %v205, %v207
    %v210 = vsel %vm136, %v206, %v208
    %v211 = vsel %vm136, %v207, %v205
    %v212 = vsel %vm136, %v208, %v206
    %v213 = vsel %vm143, 0.0, %v209
    %v214 = vsel %vm144, 0.0, %v211
    %v215 = vsel %vm143, 0.0, %v210
    %v216 = vsel %vm144, 0.0, %v212
    %v217 = vadd.f32 %v197, %v213
    %v218 = vadd.f32 %v198, %v214
    %v219 = vadd.f32 %v199, %v215
    %v220 = vadd.f32 %v200, %v216
    %v221 = vsub.f32 %v107, %v103
    %v222 = vsub.f32 %v108, %v104
    %v223 = vsub.f32 %v109, %v105
    %v224 = vsub.f32 %v110, %v106
    %v225 = vadd.f32 %v128, %v145
    %v226 = vadd.f32 %v129, %v146
    %v227 = vadd.f32 %v130, %v147
    %v228 = vadd.f32 %v131, %v148
    %v229 = vsub.f32 %v225, %v103
    %v230 = vsub.f32 %v226, %v104
    %v231 = vsub.f32 %v227, %v105
    %v232 = vsub.f32 %v228, %v106
    %v233 = vadd.f32 %v221, %v229
    %v234 = vadd.f32 %v222, %v230
    %v235 = vadd.f32 %v223, %v231
    %v236 = vadd.f32 %v224, %v232
    %vm237 = vcmask 130048
    %238 = vst.msk [vmem:[#allocation5] sm:$0xff] %vm237, %v181
    %239 = vst.msk [vmem:[#allocation5 + $0x8] sm:$0xff] %vm237, %v182
    %240 = vst.msk [vmem:[#allocation5 + $0x50] sm:$0xff] %vm237, %v183
    %241 = vst.msk [vmem:[#allocation5 + $0x58] sm:$0xff] %vm237, %v184
    %s242 = scalar_lea.vmem [#allocation5], 16
    %243 = vst.msk [vmem:[%s242] sm:$0xff] %vm237, %v217
    %244 = vst.msk [vmem:[%s242 + $0x8] sm:$0xff] %vm237, %v218
    %245 = vst.msk [vmem:[%s242 + $0x50] sm:$0xff] %vm237, %v219
    %246 = vst.msk [vmem:[%s242 + $0x58] sm:$0xff] %vm237, %v220
    %s247 = scalar_lea.vmem [#allocation5], 32
    %248 = vst.msk [vmem:[%s247] sm:$0xff] %vm237, %v221
    %249 = vst.msk [vmem:[%s247 + $0x8] sm:$0xff] %vm237, %v222
    %250 = vst.msk [vmem:[%s247 + $0x50] sm:$0xff] %vm237, %v223
    %251 = vst.msk [vmem:[%s247 + $0x58] sm:$0xff] %vm237, %v224
    %s252 = scalar_lea.vmem [#allocation5], 48
    %253 = vst.msk [vmem:[%s252] sm:$0xff] %vm237, %v233
    %254 = vst.msk [vmem:[%s252 + $0x8] sm:$0xff] %vm237, %v234
    %255 = vst.msk [vmem:[%s252 + $0x50] sm:$0xff] %vm237, %v235
    %256 = vst.msk [vmem:[%s252 + $0x58] sm:$0xff] %vm237, %v236
    %s257 = scalar_lea.vmem [#allocation5], 64
    %258 = vst.msk [vmem:[%s257] sm:$0xff] %vm237, %v229
    %259 = vst.msk [vmem:[%s257 + $0x8] sm:$0xff] %vm237, %v230
    %260 = vst.msk [vmem:[%s257 + $0x50] sm:$0xff] %vm237, %v231
    %261 = vst.msk [vmem:[%s257 + $0x58] sm:$0xff] %vm237, %v232
    // Predicated region
    $region10: #{tpu_custom_call.1} parent=1 // pred_check
      _
    $region11: #{tpu_custom_call.1} parent=1 // pred_check_branch
      %263 = sbr.rel (0) target = $region13
    $region12: #{tpu_custom_call.1} parent=1 // pred_region
      %s265 = ssub.s32 2560, 2560
      %266 = vsyncadd [#allocation4], %s265
      %s267 = sshll.u32 [#allocation5], 4
      %s268 = int_to_ptr.vmem [resolvable:$true] %s267
      %273 = dma.vmem_to_hbm [thread:$0]  %s268, 2560, %s1, [#allocation4], 128, 128, 8
    $region13: #{tpu_custom_call.1} parent=1 // pred_fallthru
      _
    // Predicated region
    $region14: #{tpu_custom_call.1} parent=1 // pred_check
      _
    $region15: #{tpu_custom_call.1} parent=1 // pred_check_branch
      %275 = sbr.rel (0) target = $region17
    $region16: #{tpu_custom_call.1} parent=1 // pred_region
      %276 = dma.done [#allocation4], 2560
    $region17: #{tpu_custom_call.1} parent=1 // pred_fallthru
      _
    %277 = vsyncpa [#allocation3], 1
    %278 = vsyncpa [#allocation4], 1

</llo_original>
